<compile_context>
chip_gen: v6e
topology: v6e:2x2x1
jax: 0.10.0
libtpu: 0.0.40
codegen_flags: <defaults>
</compile_context>

<pallas_src>
import math

import jax
import jax.numpy as jnp
from jax.experimental import pallas as pl
from jax.experimental.pallas import tpu as pltpu


# ------------------------------ kernel --------------------------------------


def _diag_lower_kernel(m_ref, x_ref, o_ref):
    """m_ref: (1, lane_tile) 0/1 mask (VMEM-resident across grid steps).
    x_ref / o_ref: (rows, lane_tile) tile.  Sublane-broadcast multiply."""
    o_ref[...] = x_ref[...] * m_ref[...]


# ------------------------------ tiling --------------------------------------


def _choose_tiling(n_rows, lane, itemsize, target_block_bytes):
    """Pick (rows, lane_tile) obeying the (8,128)/full-extent block rules."""
    row_bytes = lane * itemsize
    total_bytes = n_rows * row_bytes
    rows_fit = target_block_bytes // max(1, row_bytes)

    lane_tile = lane
    if rows_fit >= n_rows:
        # Whole array fits one block.  If it is big enough to matter, split
        # into >= 2 blocks so v7x's two TensorCores share the copy.
        if total_bytes > (1 << 20) and n_rows >= 16:
            rows = max(8, (((n_rows + 1) // 2) // 8) * 8)
        else:
            rows = n_rows
    elif rows_fit >= 8:
        rows = (rows_fit // 8) * 8          # multiple of 8, >= 8, < n_rows
    else:
        # A single fused row exceeds the budget (huge spatial map).
        rows = min(8, n_rows)               # multiple of 8 or full extent
        if lane % 128 == 0 and lane > 128:
            lt = (target_block_bytes // max(1, rows * itemsize)) // 128 * 128
            lane_tile = int(min(lane, max(128, lt)))
        # else: lane stays the full extent (rare; one oversized block).
    return int(rows), int(lane_tile)


# ------------------------------ wrapper -------------------------------------


def diagonal_lower_split(x, *, target_block_bytes=8 * 1024 * 1024):
    """x: (B, C, H, W).  Returns x with the strict upper triangle of every
    HxW spatial map zeroed, exactly matching x * (1 - triu(ones(H,W), 1))."""
    b, c, h, w = x.shape
    n = b * c
    hw = h * w
    itemsize = jnp.dtype(x.dtype).itemsize

    # Fuse g maps per row so the lane dim becomes a multiple of 128 if we can.
    g = 1
    if hw % 128 != 0:
        need = 128 // math.gcd(hw, 128)
        if n % need == 0:
            g = need
    lane = g * hw
    n_rows = n // g

    # Precompute the 0/1 keep mask once (repeats with period hw along lanes).
    row_idx = jnp.arange(h, dtype=jnp.int32)[:, None]
    col_idx = jnp.arange(w, dtype=jnp.int32)[None, :]
    keep = (row_idx >= col_idx).astype(x.dtype).reshape(1, hw)
    mask = jnp.tile(keep, (1, g)) if g > 1 else keep            # (1, lane)

    rows, lane_tile = _choose_tiling(n_rows, lane, itemsize, target_block_bytes)
    grid = (pl.cdiv(n_rows, rows), pl.cdiv(lane, lane_tile))

    # Explicit scoped-VMEM budget: double-buffered in+out blocks + mask +
    # headroom.  Clamped to [32 MiB, 48 MiB] so it is generous on v5e/v6e
    # (128 MiB physical) and still safe on v7x (64 MiB physical).
    block_bytes = rows * lane_tile * itemsize
    vmem_needed = 4 * block_bytes + 4 * lane_tile * itemsize + (4 << 20)
    vmem_limit = int(min(max(vmem_needed, 32 << 20), 48 << 20))

    x2 = x.reshape(n_rows, lane)
    out = pl.pallas_call(
        _diag_lower_kernel,
        out_shape=jax.ShapeDtypeStruct((n_rows, lane), x.dtype),
        grid_spec=pl.GridSpec(
            grid=grid,
            in_specs=[
                pl.BlockSpec((1, lane_tile), lambda i, j: (0, j)),      # mask
                pl.BlockSpec((rows, lane_tile), lambda i, j: (i, j)),   # x
            ],
            out_specs=pl.BlockSpec((rows, lane_tile), lambda i, j: (i, j)),
        ),
        compiler_params=pltpu.CompilerParams(
            dimension_semantics=("parallel", "parallel"),
            vmem_limit_bytes=vmem_limit,
        ),
        cost_estimate=pl.CostEstimate(
            flops=int(n * hw),
            transcendentals=0,
            bytes_accessed=int(2 * n * hw * itemsize),
        ),
    )(mask, x2)
    return out.reshape(b, c, h, w)


# ------------------------------ reference -----------------------------------


def _reference(x):
    _, _, h, w = x.shape
    row = jnp.arange(h)[:, None]
    col = jnp.arange(w)[None, :]
    m = (row >= col).astype(x.dtype)      # == 1 - triu(ones, diagonal=1)
    return x * m[None, None, :, :]


if __name__ == "__main__":
    key = jax.random.PRNGKey(0)
    x = jax.random.normal(key, (2, 4, 16, 16), dtype=jnp.float32)
    out = jax.block_until_ready(diagonal_lower_split(x))
    assert out.shape == x.shape and out.dtype == x.dtype
    assert jnp.array_equal(out, _reference(x)), "mismatch vs reference"

    # Larger shape: exercises the >=2-block split (v7x dual-TensorCore path).
    x_big = jax.random.normal(jax.random.PRNGKey(1), (4, 32, 64, 64),
                              dtype=jnp.float32)
    assert jnp.array_equal(jax.block_until_ready(diagonal_lower_split(x_big)),
                           _reference(x_big))

    # H*W not a multiple of 128 and B*C not divisible by the fuse factor:
    # lane = full-extent H*W path (no (N,H,W) fallback anymore).
    x_odd = jax.random.normal(jax.random.PRNGKey(2), (2, 3, 12, 10),
                              dtype=jnp.float32)
    assert jnp.array_equal(jax.block_until_ready(diagonal_lower_split(x_odd)),
                           _reference(x_odd))

    # H*W not a multiple of 128 but B*C divisible by g=16: fused-lane path.
    x_grp = jax.random.normal(jax.random.PRNGKey(3), (4, 8, 12, 10),
                              dtype=jnp.float32)
    assert jnp.array_equal(jax.block_until_ready(diagonal_lower_split(x_grp)),
                           _reference(x_grp))

    # Non-divisible grid (partial last row block) + lane-axis tiling path.
    x_part = jax.random.normal(jax.random.PRNGKey(4), (2, 9, 16, 16),
                               dtype=jnp.float32)
    assert jnp.array_equal(
        jax.block_until_ready(
            diagonal_lower_split(x_part, target_block_bytes=4096)),
        _reference(x_part))

    print("KERNEL_OK")
</pallas_src>

<mosaic_0001>
module attributes {stable_mosaic.version = 11 : i64} {
  func.func @_diag_lower_kernel(%arg0: i32, %arg1: i32, %arg2: memref<1x256xf32, #tpu.memory_space<vmem>>, %arg3: memref<8x256xf32, #tpu.memory_space<vmem>>, %arg4: memref<8x256xf32, #tpu.memory_space<vmem>>) attributes {dimension_semantics = [#tpu.dimension_semantics<parallel>, #tpu.dimension_semantics<parallel>], iteration_bounds = array<i64: 1, 1>, scalar_prefetch = 0 : i64, scratch_operands = 0 : i64, tpu.core_type = #tpu.core_type<tc>, window_params = [{transform_indices = @transform_0, window_bounds = array<i64: 1, 256>}, {transform_indices = @transform_1, window_bounds = array<i64: 8, 256>}, {transform_indices = @transform_2, window_bounds = array<i64: 8, 256>}]} {
    %c0 = arith.constant 0 : index
    %c0_0 = arith.constant 0 : index
    %0 = vector.load %arg3[%c0, %c0_0] : memref<8x256xf32, #tpu.memory_space<vmem>>, vector<8x256xf32>
    %c0_1 = arith.constant 0 : index
    %c0_2 = arith.constant 0 : index
    %1 = vector.load %arg2[%c0_1, %c0_2] : memref<1x256xf32, #tpu.memory_space<vmem>>, vector<1x256xf32>
    %2 = vector.broadcast %1 : vector<1x256xf32> to vector<8x256xf32>
    %3 = arith.mulf %0, %2 : vector<8x256xf32>
    %c0_3 = arith.constant 0 : index
    %c0_4 = arith.constant 0 : index
    %4 = vector.load %arg4[%c0_3, %c0_4] : memref<8x256xf32, #tpu.memory_space<vmem>>, vector<8x256xf32>
    tpu.vector_store %arg4[%c0_3, %c0_4], %3 {strides = array<i32>} : memref<8x256xf32, #tpu.memory_space<vmem>>, vector<8x256xf32>,
    return
  }
  func.func @transform_0(%arg0: i32, %arg1: i32) -> (i32, i32) {
    %c0_i32 = arith.constant 0 : i32
    %c0_i32_0 = arith.constant 0 : i32
    return %c0_i32, %arg1 : i32, i32
  }
  func.func @transform_1(%arg0: i32, %arg1: i32) -> (i32, i32) {
    %c0_i32 = arith.constant 0 : i32
    return %arg0, %arg1 : i32, i32
  }
  func.func @transform_2(%arg0: i32, %arg1: i32) -> (i32, i32) {
    %c0_i32 = arith.constant 0 : i32
    return %arg0, %arg1 : i32, i32
  }
}

</mosaic_0001>

<llo_original>
// kernel: tpu_custom_call.1
$region0: #{tpu_custom_call.1}
  #allocation0 [shape = 'u32[]', space=smem, size = 0x4, offset = 0x4, fixed_abs, tag = 'smem constant byte address 0x4 - core index']
  #allocation1 [shape = 'u32[144,128]{1,0:T(1,128)}', space=vmem, size = 0x12000, scoped, tag = 'internal scratch']
  %s0 = inlined_call_operand.hbm [shape: f32[1,256], index: 0, kind: input, shape index: {}]
  %s1 = inlined_call_operand.hbm [shape: f32[8,256], index: 1, kind: input, shape index: {}]
  %s2 = inlined_call_operand.hbm [shape: f32[8,256], index: 2, kind: output, shape index: {}]
  %s3 = sld [smem:[#allocation0]]
  $region26: #{tpu_custom_call.1} parent=0
    _
  %s5 = ssub.s32 1, %s3
  %s6 = scalar_select 0, %s5, %s3
  $region1: #{tpu_custom_call.1} parent=0
    #allocation2 [shape = 'u8[1024]{0}', space=vmem, size = 0x400, scoped, tag = 'input window, operand 0, single buffered']
    #allocation3 [shape = 's32[1]{0}', space=sflag, size = 0x4, scoped, tag = 'scoped memory for tpu_custom_call.1']
    #allocation4 [shape = 's32[1]{0}', space=sflag, size = 0x4, scoped, tag = 'scoped memory for tpu_custom_call.1']
    #allocation5 [shape = 'u8[8192]{0}', space=vmem, size = 0x2000, scoped, tag = 'input window, operand 1, single buffered']
    #allocation6 [shape = 's32[1]{0}', space=sflag, size = 0x4, scoped, tag = 'scoped memory for tpu_custom_call.1']
    #allocation7 [shape = 'u8[8192]{0}', space=vmem, size = 0x2000, scoped, tag = 'output window, operand 0, single buffered']
    %7 = vsyncpa [#allocation3], 0
    %8 = vsyncpa [#allocation6], 0
    %9 = vsyncpa [#allocation4], 0
    // Predicated region
    $region2: #{tpu_custom_call.1} parent=1 // pred_check
      _
    $region3: #{tpu_custom_call.1} parent=1 // pred_check_branch
      %11 = sbr.rel (0) target = $region5
    $region4: #{tpu_custom_call.1} parent=1 // pred_region
      %s13 = ssub.s32 32, 32
      %14 = vsyncadd [#allocation3], %s13
      %s16 = sshll.u32 [#allocation2], 4
      %s17 = int_to_ptr.vmem [resolvable:$true] %s16
      %19 = dma.hbm_to_vmem [thread:$0]  %s0, 32, %s17, [#allocation3]
    $region5: #{tpu_custom_call.1} parent=1 // pred_fallthru
      _
    // Predicated region
    $region6: #{tpu_custom_call.1} parent=1 // pred_check
      _
    $region7: #{tpu_custom_call.1} parent=1 // pred_check_branch
      %21 = sbr.rel (0) target = $region9
    $region8: #{tpu_custom_call.1} parent=1 // pred_region
      %s23 = ssub.s32 256, 256
      %24 = vsyncadd [#allocation6], %s23
      %s26 = sshll.u32 [#allocation5], 4
      %s27 = int_to_ptr.vmem [resolvable:$true] %s26
      %29 = dma.hbm_to_vmem [thread:$0]  %s1, 256, %s27, [#allocation6]
    $region9: #{tpu_custom_call.1} parent=1 // pred_fallthru
      _
    // Predicated region
    $region10: #{tpu_custom_call.1} parent=1 // pred_check
      _
    $region11: #{tpu_custom_call.1} parent=1 // pred_check_branch
      %31 = sbr.rel (0) target = $region13
    $region12: #{tpu_custom_call.1} parent=1 // pred_region
      %32 = dma.done [#allocation3], 32
    $region13: #{tpu_custom_call.1} parent=1 // pred_fallthru
      _
    // Predicated region
    $region14: #{tpu_custom_call.1} parent=1 // pred_check
      _
    $region15: #{tpu_custom_call.1} parent=1 // pred_check_branch
      %34 = sbr.rel (0) target = $region17
    $region16: #{tpu_custom_call.1} parent=1 // pred_region
      %35 = dma.done [#allocation6], 256
    $region17: #{tpu_custom_call.1} parent=1 // pred_fallthru
      _
    %v36 = vld [vmem:[#allocation5] sm:$0xff]
    %v37 = vld [vmem:[#allocation5 + $0x8] sm:$0xff]
    %v38 = vld [vmem:[#allocation2] sm:$0x3]
    %v40 = vlaneseq
    %v41 = vshrl.u32 %v40, 7
    %v42 = vsub.s32 0, %v41
    %v43 = vrot.slane %v38, %v42
    %v44 = vlaneseq
    %v45 = vshrl.u32 %v44, 7
    %v46 = vsub.s32 1, %v45
    %v47 = vrot.slane %v38, %v46
    %v50 = vmul.f32 %v36, %v43
    %v51 = vmul.f32 %v37, %v47
    %52 = vst [vmem:[#allocation7] sm:$0xff] %v50
    %53 = vst [vmem:[#allocation7 + $0x8] sm:$0xff] %v51
    // Predicated region
    $region18: #{tpu_custom_call.1} parent=1 // pred_check
      _
    $region19: #{tpu_custom_call.1} parent=1 // pred_check_branch
      %55 = sbr.rel (0) target = $region21
    $region20: #{tpu_custom_call.1} parent=1 // pred_region
      %s57 = ssub.s32 256, 256
      %58 = vsyncadd [#allocation4], %s57
      %s60 = sshll.u32 [#allocation7], 4
      %s61 = int_to_ptr.vmem [resolvable:$true] %s60
      %63 = dma.vmem_to_hbm [thread:$0]  %s61, 256, %s2, [#allocation4]
    $region21: #{tpu_custom_call.1} parent=1 // pred_fallthru
      _
    // Predicated region
    $region22: #{tpu_custom_call.1} parent=1 // pred_check
      _
    $region23: #{tpu_custom_call.1} parent=1 // pred_check_branch
      %65 = sbr.rel (0) target = $region25
    $region24: #{tpu_custom_call.1} parent=1 // pred_region
      %66 = dma.done [#allocation4], 256
    $region25: #{tpu_custom_call.1} parent=1 // pred_fallthru
      _
    %67 = vsyncpa [#allocation3], 1
    %68 = vsyncpa [#allocation6], 1
    %69 = vsyncpa [#allocation4], 1

</llo_original>
